<compile_context>
chip_gen: v6e
topology: v6e:2x2x1
jax: 0.10.0
libtpu: 0.0.40
codegen_flags: <defaults>
</compile_context>

<pallas_src>
import math
import functools

import jax
import jax.numpy as jnp
from jax import lax
from jax.experimental import pallas as pl
from jax.experimental.pallas import tpu as pltpu

_MASK_VALUE = -1e30  # large finite negative (safer than -inf if rows become fully masked)


# ----------------------------- RoPE precompute (glue, plain JAX) -----------------------------
def precompute_rope_params(head_dim, theta_base=10000, context_length=4096):
    assert head_dim % 2 == 0
    inv_freq = 1.0 / theta_base ** (
        jnp.arange(0, head_dim // 2, dtype=jnp.float32) / (head_dim // 2)
    )
    positions = jnp.arange(context_length, dtype=jnp.float32)
    angles = positions[:, None] * inv_freq[None, :]           # (L, head_dim/2)
    angles = jnp.concatenate([angles, angles], axis=1)        # (L, head_dim)
    return jnp.cos(angles), jnp.sin(angles)


# ------------------------------------ sizing helpers -----------------------------------------
def _pick_tile(dim, target, mult):
    """Largest divisor of dim <= target that is a multiple of `mult`, else the full dim."""
    t = min(dim, target)
    while dim % t != 0:
        t //= 2
    if t != dim and t % mult != 0:
        return dim
    return t


def _nbytes(shape, dtype):
    return int(math.prod(shape)) * jnp.dtype(dtype).itemsize


def _vmem_limit(block_bytes, scratch_bytes):
    # double-buffered pipeline blocks + scratch, x2 safety, + 8 MiB compiler headroom
    return int(2 * (2 * block_bytes + scratch_bytes) + 8 * 1024 * 1024)


# --------------------------------- in-kernel RoPE helpers ------------------------------------
def _rotate_half(x):
    # Returns [x2, x1] (the -1 sign on the first half is pre-folded into the sin table).
    hd = x.shape[-1]
    if hd % 128 == 0:
        # lane-aligned head_dim (real Llama2 sizes): cheap XLU rotate.
        return pltpu.roll(x, shift=hd // 2, axis=-1)
    # toy / non-lane-aligned head_dim: slice + concat fallback.
    x1 = x[:, : hd // 2]
    x2 = x[:, hd // 2:]
    return jnp.concatenate([x2, x1], axis=-1)


def _rope(x, cos, sin_signed):
    # elementwise RoPE in f32 on the VPU
    return x * cos + _rotate_half(x) * sin_signed


# ---------------------------- kernel 1: tiled matmul (QKV projection) ------------------------
def _matmul_kernel(a_ref, b_ref, o_ref, acc_ref):
    @pl.when(pl.program_id(2) == 0)
    def _init():
        acc_ref[...] = jnp.zeros_like(acc_ref)

    acc_ref[...] += jnp.dot(a_ref[...], b_ref[...], preferred_element_type=jnp.float32)

    @pl.when(pl.program_id(2) == pl.num_programs(2) - 1)
    def _store():
        o_ref[...] = acc_ref[...].astype(o_ref.dtype)


def _matmul(a, b, *, out_dtype, tm=256, tn=512, tk=512):
    M, K = a.shape
    Kb, N = b.shape
    assert K == Kb
    tm = _pick_tile(M, tm, 8)
    tn = _pick_tile(N, tn, 128)
    tk = _pick_tile(K, tk, 128)
    block_bytes = (_nbytes((tm, tk), a.dtype) + _nbytes((tk, tn), b.dtype)
                   + _nbytes((tm, tn), out_dtype))
    scratch_bytes = _nbytes((tm, tn), jnp.float32)
    return pl.pallas_call(
        _matmul_kernel,
        out_shape=jax.ShapeDtypeStruct((M, N), out_dtype),
        grid_spec=pltpu.PrefetchScalarGridSpec(
            num_scalar_prefetch=0,
            grid=(M // tm, N // tn, K // tk),
            in_specs=[pl.BlockSpec((tm, tk), lambda i, j, kk: (i, kk)),
                      pl.BlockSpec((tk, tn), lambda i, j, kk: (kk, j))],
            out_specs=pl.BlockSpec((tm, tn), lambda i, j, kk: (i, j)),
            scratch_shapes=[pltpu.VMEM((tm, tn), jnp.float32)],
        ),
        compiler_params=pltpu.CompilerParams(
            dimension_semantics=("parallel", "parallel", "arbitrary"),
            vmem_limit_bytes=_vmem_limit(block_bytes, scratch_bytes)),
    )(a, b)


# ---------------------- kernel 2: flash attention with in-kernel RoPE ------------------------
def _flash_rope_kernel(q_ref, k_ref, v_ref, cq_ref, sq_ref, ck_ref, sk_ref,
                       o_ref, q_scr, m_scr, l_scr, acc_scr,
                       *, scale, q_tile, kv_tile, compute_dtype):
    i = pl.program_id(2)          # query tile
    j = pl.program_id(3)          # kv tile (innermost, "arbitrary" reduction axis)
    q_start = i * q_tile
    kv_start = j * kv_tile

    @pl.when(j == 0)
    def _init():
        m_scr[...] = jnp.full_like(m_scr, _MASK_VALUE)
        l_scr[...] = jnp.zeros_like(l_scr)
        acc_scr[...] = jnp.zeros_like(acc_scr)
        # RoPE on q once per q-tile; fold 1/sqrt(Dh) into q (avoids scaling the (S,S) scores).
        qf = q_ref[0, 0].astype(jnp.float32)
        q_scr[...] = (_rope(qf, cq_ref[...], sq_ref[...]) * scale).astype(q_scr.dtype)

    # Skip KV tiles that lie entirely in the causal future of this query tile.
    @pl.when(kv_start < q_start + q_tile)
    def _compute():
        kf = k_ref[0, 0].astype(jnp.float32)
        k_rot = _rope(kf, ck_ref[...], sk_ref[...]).astype(compute_dtype)

        # q @ k^T on the MXU: bf16 operands, f32 accumulation.
        s = lax.dot_general(q_scr[...], k_rot, (((1,), (1,)), ((), ())),
                            preferred_element_type=jnp.float32)   # (q_tile, kv_tile)

        row = q_start + lax.broadcasted_iota(jnp.int32, s.shape, 0)
        col = kv_start + lax.broadcasted_iota(jnp.int32, s.shape, 1)
        s = jnp.where(col <= row, s, _MASK_VALUE)

        m_prev = m_scr[...]
        m_new = jnp.maximum(m_prev, jnp.max(s, axis=-1, keepdims=True))
        alpha = jnp.exp(m_prev - m_new)
        p = jnp.exp(s - m_new)
        l_scr[...] = alpha * l_scr[...] + jnp.sum(p, axis=-1, keepdims=True)
        acc_scr[...] = alpha * acc_scr[...] + jnp.dot(
            p.astype(compute_dtype), v_ref[0, 0], preferred_element_type=jnp.float32)
        m_scr[...] = m_new

    @pl.when(j == pl.num_programs(3) - 1)
    def _finalize():
        inv_l = pl.reciprocal(l_scr[...], approx=True)   # EUP slot (otherwise idle)
        o_ref[0, 0] = (acc_scr[...] * inv_l).astype(o_ref.dtype)


# ---------------------- kernel 3: per-head output projection (fused concat) ------------------
def _head_proj_kernel(ctx_ref, w_ref, o_ref, acc_ref):
    h = pl.program_id(2)          # head index = reduction axis over wproj row blocks

    @pl.when(h == 0)
    def _init():
        acc_ref[...] = jnp.zeros_like(acc_ref)

    acc_ref[...] += jnp.dot(ctx_ref[0, 0], w_ref[...], preferred_element_type=jnp.float32)

    @pl.when(h == pl.num_programs(2) - 1)
    def _store():
        o_ref[0] = acc_ref[...].astype(o_ref.dtype)


# ---------------------------------------- wrapper --------------------------------------------
def mha_llama2_pallas(x, w_qkv, w_proj, cos, sin, *, num_heads,
                      compute_dtype=jnp.bfloat16, q_tile=256, kv_tile=256):
    B, S, d_in = x.shape
    d_out = w_proj.shape[0]
    assert d_out % num_heads == 0
    head_dim = d_out // num_heads
    assert head_dim % 2 == 0
    out_dtype = x.dtype

    # RoPE tables: slice to S, keep f32 for VPU elementwise math, fold rotate-half sign into sin.
    cos_s = cos[:S].astype(jnp.float32)
    sign = jnp.concatenate([-jnp.ones((head_dim // 2,), jnp.float32),
                            jnp.ones((head_dim // 2,), jnp.float32)])
    sin_s = sin[:S].astype(jnp.float32) * sign[None, :]

    # ---- 1) fused QKV projection (tiled, bf16 in / f32 accumulate) ----
    qkv2d = _matmul(x.reshape(B * S, d_in).astype(compute_dtype),
                    w_qkv.astype(compute_dtype), out_dtype=compute_dtype)   # (B*S, 3*d_out)
    # head split: plain XLA layout glue between kernels.
    qkv5d = qkv2d.reshape(B, S, 3, num_heads, head_dim).transpose(2, 0, 3, 1, 4)
    q, k, v = qkv5d[0], qkv5d[1], qkv5d[2]            # each (B, H, S, Dh), compute_dtype

    # ---- 2) flash attention with in-kernel RoPE ----
    tq = _pick_tile(S, q_tile, 8)
    tkv = _pick_tile(S, kv_tile, 8)
    scale = 1.0 / math.sqrt(head_dim)

    flash_block_bytes = (
        _nbytes((1, 1, tq, head_dim), compute_dtype) * 2        # q + out
        + _nbytes((1, 1, tkv, head_dim), compute_dtype) * 2     # k + v
        + _nbytes((tq, head_dim), jnp.float32) * 2              # cos_q + sin_q
        + _nbytes((tkv, head_dim), jnp.float32) * 2)            # cos_k + sin_k
    flash_scratch_bytes = (_nbytes((tq, head_dim), compute_dtype)
                           + 2 * _nbytes((tq, 1), jnp.float32)
                           + _nbytes((tq, head_dim), jnp.float32))

    flash_kernel = functools.partial(_flash_rope_kernel, scale=scale,
                                     q_tile=tq, kv_tile=tkv, compute_dtype=compute_dtype)
    ctx = pl.pallas_call(
        flash_kernel,
        out_shape=jax.ShapeDtypeStruct((B, num_heads, S, head_dim), compute_dtype),
        grid_spec=pltpu.PrefetchScalarGridSpec(
            num_scalar_prefetch=0,
            grid=(B, num_heads, S // tq, S // tkv),
            in_specs=[
                pl.BlockSpec((1, 1, tq, head_dim), lambda b, h, i, j: (b, h, i, 0)),
                pl.BlockSpec((1, 1, tkv, head_dim), lambda b, h, i, j: (b, h, j, 0)),
                pl.BlockSpec((1, 1, tkv, head_dim), lambda b, h, i, j: (b, h, j, 0)),
                pl.BlockSpec((tq, head_dim), lambda b, h, i, j: (i, 0)),
                pl.BlockSpec((tq, head_dim), lambda b, h, i, j: (i, 0)),
                pl.BlockSpec((tkv, head_dim), lambda b, h, i, j: (j, 0)),
                pl.BlockSpec((tkv, head_dim), lambda b, h, i, j: (j, 0)),
            ],
            out_specs=pl.BlockSpec((1, 1, tq, head_dim), lambda b, h, i, j: (b, h, i, 0)),
            scratch_shapes=[pltpu.VMEM((tq, head_dim), compute_dtype),   # rope'd, scaled q
                            pltpu.VMEM((tq, 1), jnp.float32),            # running max m
                            pltpu.VMEM((tq, 1), jnp.float32),            # running sum l
                            pltpu.VMEM((tq, head_dim), jnp.float32)],    # output accumulator
        ),
        compiler_params=pltpu.CompilerParams(
            dimension_semantics=("parallel", "parallel", "parallel", "arbitrary"),
            vmem_limit_bytes=_vmem_limit(flash_block_bytes, flash_scratch_bytes)),
    )(q, k, v, cos_s, sin_s, cos_s, sin_s)

    # ---- 3) output projection, fused per head (no concat of head outputs) ----
    proj_block_bytes = (_nbytes((1, 1, tq, head_dim), compute_dtype)
                        + _nbytes((head_dim, d_out), compute_dtype)
                        + _nbytes((1, tq, d_out), out_dtype))
    proj_scratch_bytes = _nbytes((tq, d_out), jnp.float32)

    out = pl.pallas_call(
        _head_proj_kernel,
        out_shape=jax.ShapeDtypeStruct((B, S, d_out), out_dtype),
        grid_spec=pltpu.PrefetchScalarGridSpec(
            num_scalar_prefetch=0,
            grid=(B, S // tq, num_heads),
            in_specs=[
                pl.BlockSpec((1, 1, tq, head_dim), lambda b, i, h: (b, h, i, 0)),
                pl.BlockSpec((head_dim, d_out), lambda b, i, h: (h, 0)),
            ],
            out_specs=pl.BlockSpec((1, tq, d_out), lambda b, i, h: (b, i, 0)),
            scratch_shapes=[pltpu.VMEM((tq, d_out), jnp.float32)],
        ),
        compiler_params=pltpu.CompilerParams(
            dimension_semantics=("parallel", "parallel", "arbitrary"),
            vmem_limit_bytes=_vmem_limit(proj_block_bytes, proj_scratch_bytes)),
    )(ctx, w_proj.astype(compute_dtype))
    return out


# ----------------------------------- pure-JAX reference --------------------------------------
def mha_llama2_ref(x, w_qkv, w_proj, cos, sin, *, num_heads):
    B, S, d_in = x.shape
    d_out = w_proj.shape[0]
    head_dim = d_out // num_heads
    qkv = x @ w_qkv                                       # (B, S, 3*d_out)
    qkv = qkv.reshape(B, S, 3, num_heads, head_dim).transpose(2, 0, 3, 1, 4)
    q, k, v = qkv[0], qkv[1], qkv[2]                      # (B, H, S, Dh)

    def rope(t):
        x1 = t[..., : head_dim // 2]
        x2 = t[..., head_dim // 2:]
        rot = jnp.concatenate([-x2, x1], axis=-1)
        return t * cos[None, None, :S, :] + rot * sin[None, None, :S, :]

    q, k = rope(q), rope(k)
    scores = jnp.einsum("bhqd,bhkd->bhqk", q, k) / math.sqrt(head_dim)
    mask = jnp.tril(jnp.ones((S, S), dtype=bool))
    scores = jnp.where(mask, scores, -jnp.inf)
    p = jax.nn.softmax(scores, axis=-1)
    ctx = jnp.einsum("bhqk,bhkd->bhqd", p, v)
    ctx = ctx.transpose(0, 2, 1, 3).reshape(B, S, d_out)
    return ctx @ w_proj


# --------------------------------------------- main ------------------------------------------
if __name__ == "__main__":
    B, S = 2, 8
    d_in, d_out = 32, 32
    num_heads = 4
    head_dim = d_out // num_heads
    context_length = 16

    key = jax.random.PRNGKey(0)
    kx, kqkv, kproj = jax.random.split(key, 3)
    x = jax.random.normal(kx, (B, S, d_in), dtype=jnp.float32)
    # deterministic synthetic weights (stored as (in, out), i.e. torch Linear weight transposed)
    w_qkv = 0.05 * jax.random.normal(kqkv, (d_in, 3 * d_out), dtype=jnp.float32)
    w_proj = 0.05 * jax.random.normal(kproj, (d_out, d_out), dtype=jnp.float32)

    cos, sin = precompute_rope_params(head_dim=head_dim, context_length=context_length)

    out = mha_llama2_pallas(x, w_qkv, w_proj, cos, sin, num_heads=num_heads)
    out = jax.block_until_ready(out)

    ref = mha_llama2_ref(x, w_qkv, w_proj, cos, sin, num_heads=num_heads)
    assert out.shape == (B, S, d_out)
    # kernel uses bf16 MXU operands / f32 accumulation; compare against pure-f32 reference
    assert jnp.allclose(out, ref, atol=2e-2, rtol=2e-2), "mismatch vs reference"

    print("KERNEL_OK")
</pallas_src>

<mosaic_0001>
module attributes {stable_mosaic.version = 11 : i64} {
  func.func @_matmul_kernel(%arg0: i32, %arg1: i32, %arg2: i32, %arg3: memref<16x32xbf16, #tpu.memory_space<vmem>>, %arg4: memref<32x96xbf16, #tpu.memory_space<vmem>>, %arg5: memref<16x96xbf16, #tpu.memory_space<vmem>>, %arg6: memref<16x96xf32, #tpu.memory_space<vmem>>) attributes {dimension_semantics = [#tpu.dimension_semantics<parallel>, #tpu.dimension_semantics<parallel>, #tpu.dimension_semantics<arbitrary>], iteration_bounds = array<i64: 1, 1, 1>, scalar_prefetch = 0 : i64, scratch_operands = 1 : i64, tpu.core_type = #tpu.core_type<tc>, window_params = [{transform_indices = @transform_0, window_bounds = array<i64: 16, 32>}, {transform_indices = @transform_1, window_bounds = array<i64: 32, 96>}, {transform_indices = @transform_2, window_bounds = array<i64: 16, 96>}]} {
    %c0_i32 = arith.constant 0 : i32
    %0 = arith.cmpi eq, %arg2, %c0_i32 : i32
    %1 = arith.extui %0 : i1 to i32
    %c0_i32_0 = arith.constant 0 : i32
    %2 = arith.cmpi ne, %1, %c0_i32_0 : i32
    scf.if %2 {
      %cst_10 = arith.constant 0.000000e+00 : f32
      %12 = vector.broadcast %cst_10 : f32 to vector<16x96xf32>
      %c0_11 = arith.constant 0 : index
      %c0_12 = arith.constant 0 : index
      %13 = vector.load %arg6[%c0_11, %c0_12] : memref<16x96xf32, #tpu.memory_space<vmem>>, vector<16x96xf32>
      tpu.vector_store %arg6[%c0_11, %c0_12], %12 {strides = array<i32>} : memref<16x96xf32, #tpu.memory_space<vmem>>, vector<16x96xf32>,
    } else {
    }
    %c0 = arith.constant 0 : index
    %c0_1 = arith.constant 0 : index
    %3 = vector.load %arg6[%c0, %c0_1] : memref<16x96xf32, #tpu.memory_space<vmem>>, vector<16x96xf32>
    %c0_2 = arith.constant 0 : index
    %c0_3 = arith.constant 0 : index
    %4 = vector.load %arg3[%c0_2, %c0_3] : memref<16x32xbf16, #tpu.memory_space<vmem>>, vector<16x32xbf16>
    %c0_4 = arith.constant 0 : index
    %c0_5 = arith.constant 0 : index
    %5 = vector.load %arg4[%c0_4, %c0_5] : memref<32x96xbf16, #tpu.memory_space<vmem>>, vector<32x96xbf16>
    %cst = arith.constant dense<0.000000e+00> : vector<16x96xf32>
    %6 = tpu.matmul %4, %5, %cst {dimension_numbers = #tpu.dot_dimension_numbers<[1], [0], [0], [1], [0, 0, 1, 1], [], []>} : vector<16x32xbf16>, vector<32x96xbf16>, vector<16x96xf32> -> vector<16x96xf32>
    %7 = arith.addf %3, %6 : vector<16x96xf32>
    %c0_6 = arith.constant 0 : index
    %c0_7 = arith.constant 0 : index
    %8 = vector.load %arg6[%c0_6, %c0_7] : memref<16x96xf32, #tpu.memory_space<vmem>>, vector<16x96xf32>
    tpu.vector_store %arg6[%c0_6, %c0_7], %7 {strides = array<i32>} : memref<16x96xf32, #tpu.memory_space<vmem>>, vector<16x96xf32>,
    %c0_i32_8 = arith.constant 0 : i32
    %9 = arith.cmpi eq, %arg2, %c0_i32_8 : i32
    %10 = arith.extui %9 : i1 to i32
    %c0_i32_9 = arith.constant 0 : i32
    %11 = arith.cmpi ne, %10, %c0_i32_9 : i32
    scf.if %11 {
      %c0_10 = arith.constant 0 : index
      %c0_11 = arith.constant 0 : index
      %12 = vector.load %arg6[%c0_10, %c0_11] : memref<16x96xf32, #tpu.memory_space<vmem>>, vector<16x96xf32>
      %13 = arith.truncf %12 : vector<16x96xf32> to vector<16x96xbf16>
      %c0_12 = arith.constant 0 : index
      %c0_13 = arith.constant 0 : index
      %14 = vector.load %arg5[%c0_12, %c0_13] : memref<16x96xbf16, #tpu.memory_space<vmem>>, vector<16x96xbf16>
      tpu.vector_store %arg5[%c0_12, %c0_13], %13 {strides = array<i32>} : memref<16x96xbf16, #tpu.memory_space<vmem>>, vector<16x96xbf16>,
    } else {
    }
    return
  }
  func.func @transform_0(%arg0: i32, %arg1: i32, %arg2: i32) -> (i32, i32) {
    %c0_i32 = arith.constant 0 : i32
    return %arg0, %arg2 : i32, i32
  }
  func.func @transform_1(%arg0: i32, %arg1: i32, %arg2: i32) -> (i32, i32) {
    %c0_i32 = arith.constant 0 : i32
    return %arg2, %arg1 : i32, i32
  }
  func.func @transform_2(%arg0: i32, %arg1: i32, %arg2: i32) -> (i32, i32) {
    %c0_i32 = arith.constant 0 : i32
    return %arg0, %arg1 : i32, i32
  }
}

</mosaic_0001>

<llo_original>
// kernel: tpu_custom_call.1
$region0: #{tpu_custom_call.1}
  #allocation0 [shape = 'u32[]', space=smem, size = 0x4, offset = 0x4, fixed_abs, tag = 'smem constant byte address 0x4 - core index']
  #allocation1 [shape = 'u32[144,128]{1,0:T(1,128)}', space=vmem, size = 0x12000, scoped, tag = 'internal scratch']
  #allocation2 [shape = 'f32[16,96]{1,0:T(8,128)}', space=vmem, size = 0x2000, scoped, tag = 'scratch operand']
  %s0 = inlined_call_operand.hbm [shape: bf16[16,32], index: 0, kind: input, shape index: {}]
  %s1 = inlined_call_operand.hbm [shape: bf16[32,96], index: 1, kind: input, shape index: {}]
  %s2 = inlined_call_operand.hbm [shape: bf16[16,96], index: 2, kind: output, shape index: {}]
  %s3 = sld [smem:[#allocation0]]
  $region34: #{tpu_custom_call.1} parent=0
    _
  %s5 = ssub.s32 1, %s3
  %s6 = scalar_select 0, %s5, %s3
  $region1: #{tpu_custom_call.1} parent=0
    #allocation3 [shape = 'u8[4096]{0}', space=vmem, size = 0x1000, scoped, tag = 'input window, operand 0, single buffered']
    #allocation4 [shape = 's32[1]{0}', space=sflag, size = 0x4, scoped, tag = 'scoped memory for tpu_custom_call.1']
    #allocation5 [shape = 's32[1]{0}', space=sflag, size = 0x4, scoped, tag = 'scoped memory for tpu_custom_call.1']
    #allocation6 [shape = 'u8[8192]{0}', space=vmem, size = 0x2000, scoped, tag = 'input window, operand 1, single buffered']
    #allocation7 [shape = 's32[1]{0}', space=sflag, size = 0x4, scoped, tag = 'scoped memory for tpu_custom_call.1']
    #allocation8 [shape = 'u8[4096]{0}', space=vmem, size = 0x1000, scoped, tag = 'output window, operand 0, single buffered']
    %7 = vsyncpa [#allocation4], 0
    %8 = vsyncpa [#allocation7], 0
    %9 = vsyncpa [#allocation5], 0
    // Predicated region
    $region2: #{tpu_custom_call.1} parent=1 // pred_check
      _
    $region3: #{tpu_custom_call.1} parent=1 // pred_check_branch
      %11 = sbr.rel (0) target = $region5
    $region4: #{tpu_custom_call.1} parent=1 // pred_region
      %s13 = ssub.s32 128, 128
      %14 = vsyncadd [#allocation4], %s13
      %s15 = sshll.u32 [#allocation3], 4
      %s16 = int_to_ptr.vmem [resolvable:$true] %s15
      %21 = dma.hbm_to_vmem [thread:$0]  %s0, 128, %s16, [#allocation4], 64, 64, 4
    $region5: #{tpu_custom_call.1} parent=1 // pred_fallthru
      _
    // Predicated region
    $region6: #{tpu_custom_call.1} parent=1 // pred_check
      _
    $region7: #{tpu_custom_call.1} parent=1 // pred_check_branch
      %23 = sbr.rel (0) target = $region9
    $region8: #{tpu_custom_call.1} parent=1 // pred_region
      %s25 = ssub.s32 256, 256
      %26 = vsyncadd [#allocation7], %s25
      %s27 = sshll.u32 [#allocation6], 4
      %s28 = int_to_ptr.vmem [resolvable:$true] %s27
      %33 = dma.hbm_to_vmem [thread:$0]  %s1, 256, %s28, [#allocation7], 64, 64, 4
    $region9: #{tpu_custom_call.1} parent=1 // pred_fallthru
      _
    // Predicated region
    $region10: #{tpu_custom_call.1} parent=1 // pred_check
      _
    $region11: #{tpu_custom_call.1} parent=1 // pred_check_branch
      %35 = sbr.rel (0) target = $region13
    $region12: #{tpu_custom_call.1} parent=1 // pred_region
      %36 = dma.done [#allocation4], 128
    $region13: #{tpu_custom_call.1} parent=1 // pred_fallthru
      _
    // Predicated region
    $region14: #{tpu_custom_call.1} parent=1 // pred_check
      _
    $region15: #{tpu_custom_call.1} parent=1 // pred_check_branch
      %38 = sbr.rel (0) target = $region17
    $region16: #{tpu_custom_call.1} parent=1 // pred_region
      %39 = dma.done [#allocation7], 256
    $region17: #{tpu_custom_call.1} parent=1 // pred_fallthru
      _
    %p41 = scmp.eq.s32.totalorder 0, 0
    // Predicated region
    $region18: #{tpu_custom_call.1} parent=1 // pred_check
      %p42 = pneg %p41
    $region19: #{tpu_custom_call.1} parent=1 // pred_check_branch
      %44 = sbr.rel (%p42) target = $region21
    $region20: #{tpu_custom_call.1} parent=1 // pred_region
      %vm45 = vcmask 785408
      %46 = vst.msk [vmem:[#allocation2] sm:$0xff] %vm45, 0.0
      %47 = vst.msk [vmem:[#allocation2 + $0x8] sm:$0xff] %vm45, 0.0
    $region21: #{tpu_custom_call.1} parent=1 // pred_fallthru
      _
    %v48 = vld [vmem:[#allocation2] sm:$0xff]
    %v49 = vld [vmem:[#allocation2 + $0x8] sm:$0xff]
    %v50 = vld [vmem:[#allocation3] sm:$0xf]
    %v51 = vld [vmem:[#allocation3 + $0x4] sm:$0xf]
    %v52 = vld [vmem:[#allocation6] sm:$0xf]
    %v53 = vld [vmem:[#allocation6 + $0x4] sm:$0xf]
    %v54 = vld [vmem:[#allocation6 + $0x8] sm:$0xf]
    %v55 = vld [vmem:[#allocation6 + $0xc] sm:$0xf]
    %v58 = vunpack.c.l.b16 %v50
    %v59 = vunpack.c.l.b16 %v51
    %v60 = vpack.c.b16 %v59, %v58
    %v65 = vunpack.c.l.b16 %v52
    %v66 = vunpack.c.l.b16 %v53
    %v67 = vunpack.c.l.b16 %v54
    %v68 = vunpack.c.l.b16 %v55
    %v69 = vpack.c.b16 %v66, %v65
    %v70 = vpack.c.b16 %v68, %v67
    %vm73 = vcmask 261120
    %v75 = vsel %vm73, %v60, 0
    %77 = vmatprep.subr.bf16.mxu0 0
    %78 = vmatpush1.bf16.msra.mxu0 0
    %79 = vmatprep.subr.bf16.mxu0 0
    %80 = vmatpush1.bf16.msra.mxu0 0
    %81 = vmatprep.subr.bf16.mxu0 0
    %82 = vmatpush1.bf16.msra.mxu0 0
    %83 = vmatprep.subr.bf16.mxu0 0
    %84 = vmatpush1.bf16.msra.mxu0 0
    %85 = vmatprep.subr.bf16.mxu0 0
    %86 = vmatpush1.bf16.msra.mxu0 0
    %87 = vmatprep.subr.bf16.mxu0 0
    %88 = vmatpush1.bf16.msra.mxu0 0
    %89 = vmatprep.subr.bf16.mxu0 0
    %90 = vmatpush1.bf16.msra.mxu0 %v70
    %91 = vmatprep.subr.bf16.mxu0 0
    %92 = vmatpush1.bf16.msra.mxu0 %v69
    %93 = vmatprep.subr.bf16.mxu0 0
    %94 = vmatpush2.bf16.msra.mxu0 0
    %95 = vmatprep.subr.bf16.mxu0 0
    %96 = vmatpush2.bf16.msra.mxu0 0
    %97 = vmatprep.subr.bf16.mxu0 0
    %98 = vmatpush2.bf16.msra.mxu0 0
    %99 = vmatprep.subr.bf16.mxu0 0
    %100 = vmatpush2.bf16.msra.mxu0 0
    %101 = vmatprep.subr.bf16.mxu0 0
    %102 = vmatpush2.bf16.msra.mxu0 0
    %103 = vmatprep.subr.bf16.mxu0 0
    %104 = vmatpush2.bf16.msra.mxu0 0
    %105 = vmatprep.subr.bf16.mxu0 0
    %106 = vmatpush2.bf16.msra.mxu0 0
    %107 = vmatprep.subr.bf16.mxu0 0
    %108 = vmatpush2.bf16.msra.mxu0 0
    %109 = vmatprep.mubr.bf16.mxu0 0
    %110 = vmatmul.mubr.bf16.gmra.mxu0 %v75
    %v111 = vpop.f32.mrf.mxu0
    %v112 = vadd.f32 0.0, %v111
    %v113 = vpop.f32.mrf.mxu0
    %v114 = vpop.f32.mrf.mxu0
    %v115 = vadd.f32 0.0, %v114
    %v116 = vpop.f32.mrf.mxu0
    %117 = vdwg.mxu0
    %v118 = vadd.f32 %v48, %v112
    %v119 = vadd.f32 %v49, %v115
    %vm120 = vcmask 785408
    %121 = vst.msk [vmem:[#allocation2] sm:$0xff] %vm120, %v118
    %122 = vst.msk [vmem:[#allocation2 + $0x8] sm:$0xff] %vm120, %v119
    // Predicated region
    $region22: #{tpu_custom_call.1} parent=1 // pred_check
      %p123 = pneg %p41
    $region23: #{tpu_custom_call.1} parent=1 // pred_check_branch
      %125 = sbr.rel (%p123) target = $region25
    $region24: #{tpu_custom_call.1} parent=1 // pred_region
      %v126 = vld [vmem:[#allocation2] sm:$0xff]
      %v127 = vld [vmem:[#allocation2 + $0x8] sm:$0xff]
      %v128 = vpack.c.bf16 %v127, %v126
      %v130 = vunpack.c.l.b16 %v128
      %v131 = vunpack.c.h.b16 %v128
      %v132 = vpack.c.b16 %v130, %v130
      %v133 = vpack.c.b16 %v131, %v131
      %vm136 = vcmask 781312
      %137 = vst.msk [vmem:[#allocation8] sm:$0xf] %vm136, %v132
      %138 = vst.msk [vmem:[#allocation8 + $0x4] sm:$0xf] %vm136, %v133
    $region25: #{tpu_custom_call.1} parent=1 // pred_fallthru
      _
    // Predicated region
    $region26: #{tpu_custom_call.1} parent=1 // pred_check
      _
    $region27: #{tpu_custom_call.1} parent=1 // pred_check_branch
      %140 = sbr.rel (0) target = $region29
    $region28: #{tpu_custom_call.1} parent=1 // pred_region
      %s142 = ssub.s32 128, 128
      %143 = vsyncadd [#allocation5], %s142
      %s144 = sshll.u32 [#allocation8], 4
      %s145 = int_to_ptr.vmem [resolvable:$true] %s144
      %150 = dma.vmem_to_hbm [thread:$0]  %s145, 128, %s2, [#allocation5], 64, 64, 4
    $region29: #{tpu_custom_call.1} parent=1 // pred_fallthru
      _
    // Predicated region
    $region30: #{tpu_custom_call.1} parent=1 // pred_check
      _
    $region31: #{tpu_custom_call.1} parent=1 // pred_check_branch
      %152 = sbr.rel (0) target = $region33
    $region32: #{tpu_custom_call.1} parent=1 // pred_region
      %153 = dma.done [#allocation5], 128
    $region33: #{tpu_custom_call.1} parent=1 // pred_fallthru
      _
    %154 = vsyncpa [#allocation4], 1
    %155 = vsyncpa [#allocation7], 1
    %156 = vsyncpa [#allocation5], 1

</llo_original>
